<compile_context>
chip_gen: v5e
topology: v5e:2x2
jax: 0.10.0
libtpu: 0.0.40
codegen_flags: <defaults>
</compile_context>

<pallas_src>
import functools
import math

import jax
import jax.numpy as jnp
from jax import lax
from jax.experimental import pallas as pl
from jax.experimental.pallas import tpu as pltpu


def _mha_kernel(x_ref, wqkv_ref, wo_ref, o_ref, *,
                n_heads, head_d, n_batch, seq, compute_dtype):
    d_emb = n_heads * head_d

    x = x_ref[...]                    # (B*T, D)
    wqkv = wqkv_ref[...]              # (D, 3D) input-major, fused [Wq^T|Wk^T|Wv^T]
    wo = wo_ref[...]                  # (D, D)  input-major Wo^T

    # Fused full-width QKV projection: one (B*T, D) @ (D, 3D) MXU pass.
    qkv = jnp.dot(x.astype(compute_dtype), wqkv,
                  preferred_element_type=jnp.float32)          # (B*T, 3D) f32

    # Fold the attention scale into q (B*T*hd multiplies instead of T*T per head).
    scale = jnp.float32(1.0 / math.sqrt(head_d))
    q = qkv[:, 0:d_emb] * scale
    k = qkv[:, d_emb:2 * d_emb]
    v = qkv[:, 2 * d_emb:3 * d_emb]

    # Additive causal bias built once, shared across all batches and heads.
    # Large finite negative (not -inf) so a fully masked row can never NaN.
    row = lax.broadcasted_iota(jnp.int32, (seq, seq), 0)
    col = lax.broadcasted_iota(jnp.int32, (seq, seq), 1)
    bias = jnp.where(col > row, jnp.float32(-1e30), jnp.float32(0.0))  # (T, T)

    # Small static loops over batch and head (toy shapes); head/batch slices
    # are static sublane/lane slices of the projection slabs.
    for b in range(n_batch):
        r0 = b * seq
        acc = jnp.zeros((seq, d_emb), jnp.float32)
        for h in range(n_heads):
            lo = h * head_d
            qh = q[r0:r0 + seq, lo:lo + head_d]                # (T, hd)
            kh = k[r0:r0 + seq, lo:lo + head_d]                # (T, hd)
            vh = v[r0:r0 + seq, lo:lo + head_d]                # (T, hd)

            # scores = qh @ kh.T without materializing the transpose.
            s = lax.dot_general(
                qh.astype(compute_dtype), kh.astype(compute_dtype),
                dimension_numbers=(((1,), (1,)), ((), ())),
                preferred_element_type=jnp.float32) + bias     # (T, T)

            m = jnp.max(s, axis=-1, keepdims=True)             # (T, 1)
            p = jnp.exp(s - m)                                 # (T, T)
            denom = jnp.sum(p, axis=-1, keepdims=True)         # (T, 1)

            ctx_h = jnp.dot(p.astype(compute_dtype), vh.astype(compute_dtype),
                            preferred_element_type=jnp.float32)  # (T, hd)
            # Deferred softmax normalization: EUP reciprocal + T*hd multiplies.
            ctx_h = ctx_h * pl.reciprocal(denom, approx=True)

            # Accumulate this head's contribution to the final projection
            # directly (replaces the lane-concat + single big final matmul).
            acc = acc + jnp.dot(ctx_h.astype(compute_dtype), wo[lo:lo + head_d, :],
                                preferred_element_type=jnp.float32)

        o_ref[r0:r0 + seq, :] = acc.astype(o_ref.dtype)


def causal_multi_head_attention(x, w_query, w_key, w_value, w_final, n_heads,
                                compute_dtype=jnp.float32):
    """x: (B, T, D); weights: (D, D) in PyTorch (out_features, in_features) layout.

    compute_dtype: dtype of MXU operands (use jnp.bfloat16 on v6e/v7x for
    ~4x MXU throughput and half the weight HBM/VMEM bytes; accumulation and
    softmax stay f32).
    """
    B, T, D = x.shape
    hd = D // n_heads

    # PyTorch Linear is y = x @ W.T: pre-transpose once to input-major and
    # fuse Q/K/V into a single (D, 3D) slab.
    wqkv_t = jnp.concatenate(
        [jnp.transpose(w_query), jnp.transpose(w_key), jnp.transpose(w_value)],
        axis=1).astype(compute_dtype)                              # (D, 3D)
    wo_t = jnp.transpose(w_final).astype(compute_dtype)            # (D, D)

    # Fold batch into the row dimension: the kernel works on a (B*T, D) slab,
    # so the grid has a single step, weights are loaded exactly once, and the
    # output is one lane-dense slab.
    x2 = x.reshape(B * T, D)

    kernel = functools.partial(_mha_kernel, n_heads=n_heads, head_d=hd,
                               n_batch=B, seq=T, compute_dtype=compute_dtype)

    out = pl.pallas_call(
        kernel,
        out_shape=jax.ShapeDtypeStruct((B * T, D), x.dtype),
        grid_spec=pltpu.PrefetchScalarGridSpec(
            num_scalar_prefetch=0,
            grid=(1,),
            in_specs=[
                pl.BlockSpec((B * T, D), lambda i: (0, 0)),
                pl.BlockSpec((D, 3 * D), lambda i: (0, 0)),
                pl.BlockSpec((D, D), lambda i: (0, 0)),
            ],
            out_specs=pl.BlockSpec((B * T, D), lambda i: (0, 0)),
        ),
        compiler_params=pltpu.CompilerParams(
            # Single grid step: nothing to pipeline, nothing to shard, and
            # the grid-invariant weights are effectively single-buffered.
            dimension_semantics=("arbitrary",),
            vmem_limit_bytes=32 * 1024 * 1024),
    )(x2, wqkv_t, wo_t)

    return out.reshape(B, T, D)


def _reference(x, w_query, w_key, w_value, w_final, n_heads):
    """Pure-JAX mirror of the PyTorch forward for validation."""
    B, T, D = x.shape
    hd = D // n_heads
    q = (x @ w_query.T).reshape(B, T, n_heads, hd).transpose(0, 2, 1, 3)
    k = (x @ w_key.T).reshape(B, T, n_heads, hd).transpose(0, 2, 1, 3)
    v = (x @ w_value.T).reshape(B, T, n_heads, hd).transpose(0, 2, 1, 3)
    scores = q @ k.transpose(0, 1, 3, 2)
    mask = jnp.triu(jnp.ones((T, T), dtype=bool), k=1)
    scores = jnp.where(mask[None, None], -jnp.inf, scores)
    attn = jax.nn.softmax(scores / math.sqrt(hd), axis=-1)
    ctx = (attn @ v).transpose(0, 2, 1, 3).reshape(B, T, D)
    return ctx @ w_final.T


if __name__ == "__main__":
    # Config: d_emb=32, n_heads=4 (head_d_emb=8), n_blocks (seq)=8, batch=2.
    B, T, D, H = 2, 8, 32, 4

    key = jax.random.PRNGKey(0)
    kx, kq, kk, kv, ko = jax.random.split(key, 5)

    bound = 1.0 / math.sqrt(D)  # PyTorch nn.Linear default uniform init
    x = jax.random.normal(kx, (B, T, D), dtype=jnp.float32)
    w_query = jax.random.uniform(kq, (D, D), jnp.float32, -bound, bound)
    w_key = jax.random.uniform(kk, (D, D), jnp.float32, -bound, bound)
    w_value = jax.random.uniform(kv, (D, D), jnp.float32, -bound, bound)
    w_final = jax.random.uniform(ko, (D, D), jnp.float32, -bound, bound)

    out = causal_multi_head_attention(x, w_query, w_key, w_value, w_final, H)
    out = jax.block_until_ready(out)

    ref = _reference(x, w_query, w_key, w_value, w_final, H)
    assert out.shape == (B, T, D)
    # approx=True reciprocal in the softmax denominator (EUP vrcp) carries
    # ~1e-4 relative error, so compare at 2e-3 instead of 1e-5.
    assert jnp.allclose(out, ref, atol=2e-3, rtol=2e-3), "mismatch vs reference"

    print("KERNEL_OK")
</pallas_src>

<mosaic_0001>
module attributes {stable_mosaic.version = 11 : i64} {
  func.func @_mha_kernel(%arg0: i32, %arg1: memref<16x32xf32, #tpu.memory_space<vmem>>, %arg2: memref<32x96xf32, #tpu.memory_space<vmem>>, %arg3: memref<32x32xf32, #tpu.memory_space<vmem>>, %arg4: memref<16x32xf32, #tpu.memory_space<vmem>>) attributes {dimension_semantics = [#tpu.dimension_semantics<arbitrary>], iteration_bounds = array<i64: 1>, scalar_prefetch = 0 : i64, scratch_operands = 0 : i64, tpu.core_type = #tpu.core_type<tc>, window_params = [{pipeline_mode = #tpu.pipeline_mode<synchronous>, transform_indices = @transform_0, window_bounds = array<i64: 16, 32>}, {pipeline_mode = #tpu.pipeline_mode<synchronous>, transform_indices = @transform_1, window_bounds = array<i64: 32, 96>}, {pipeline_mode = #tpu.pipeline_mode<synchronous>, transform_indices = @transform_2, window_bounds = array<i64: 32, 32>}, {pipeline_mode = #tpu.pipeline_mode<synchronous>, transform_indices = @transform_3, window_bounds = array<i64: 16, 32>}]} {
    %c0 = arith.constant 0 : index
    %c0_0 = arith.constant 0 : index
    %0 = vector.load %arg1[%c0, %c0_0] : memref<16x32xf32, #tpu.memory_space<vmem>>, vector<16x32xf32>
    %c0_1 = arith.constant 0 : index
    %c0_2 = arith.constant 0 : index
    %1 = vector.load %arg2[%c0_1, %c0_2] : memref<32x96xf32, #tpu.memory_space<vmem>>, vector<32x96xf32>
    %c0_3 = arith.constant 0 : index
    %c0_4 = arith.constant 0 : index
    %2 = vector.load %arg3[%c0_3, %c0_4] : memref<32x32xf32, #tpu.memory_space<vmem>>, vector<32x32xf32>
    %cst = arith.constant dense<0.000000e+00> : vector<16x96xf32>
    %3 = tpu.matmul %0, %1, %cst {dimension_numbers = #tpu.dot_dimension_numbers<[1], [0], [0], [1], [0, 0, 1, 1], [], []>} : vector<16x32xf32>, vector<32x96xf32>, vector<16x96xf32> -> vector<16x96xf32>
    %4 = vector.extract_strided_slice %3 {offsets = [0, 0], sizes = [16, 32], strides = [1, 1]} : vector<16x96xf32> to vector<16x32xf32>
    %cst_5 = arith.constant 0.353553385 : f32
    %5 = vector.broadcast %cst_5 : f32 to vector<16x32xf32>
    %6 = arith.mulf %4, %5 : vector<16x32xf32>
    %7 = vector.extract_strided_slice %3 {offsets = [0, 32], sizes = [16, 32], strides = [1, 1]} : vector<16x96xf32> to vector<16x32xf32>
    %8 = vector.extract_strided_slice %3 {offsets = [0, 64], sizes = [16, 32], strides = [1, 1]} : vector<16x96xf32> to vector<16x32xf32>
    %9 = tpu.iota {dimensions = array<i32: 0>} : vector<8x8xi32>
    %10 = tpu.iota {dimensions = array<i32: 1>} : vector<8x8xi32>
    %11 = arith.cmpi sgt, %10, %9 : vector<8x8xi32>
    %cst_6 = arith.constant -1.000000e+30 : f32
    %cst_7 = arith.constant 0.000000e+00 : f32
    %12 = vector.broadcast %cst_6 : f32 to vector<8x8xf32>
    %13 = vector.broadcast %cst_7 : f32 to vector<8x8xf32>
    %14 = arith.select %11, %12, %13 : vector<8x8xi1>, vector<8x8xf32>
    %cst_8 = arith.constant 0.000000e+00 : f32
    %15 = vector.broadcast %cst_8 : f32 to vector<8x32xf32>
    %16 = vector.extract_strided_slice %6 {offsets = [0, 0], sizes = [8, 8], strides = [1, 1]} : vector<16x32xf32> to vector<8x8xf32>
    %17 = vector.extract_strided_slice %7 {offsets = [0, 0], sizes = [8, 8], strides = [1, 1]} : vector<16x32xf32> to vector<8x8xf32>
    %18 = vector.extract_strided_slice %8 {offsets = [0, 0], sizes = [8, 8], strides = [1, 1]} : vector<16x32xf32> to vector<8x8xf32>
    %cst_9 = arith.constant dense<0.000000e+00> : vector<8x8xf32>
    %19 = tpu.matmul %16, %17, %cst_9 {dimension_numbers = #tpu.dot_dimension_numbers<[1], [1], [0], [0], [0, 0, 1, 0], [], []>} : vector<8x8xf32>, vector<8x8xf32>, vector<8x8xf32> -> vector<8x8xf32>
    %20 = arith.addf %19, %14 : vector<8x8xf32>
    %cst_10 = arith.constant dense<0xFF800000> : vector<8xf32>
    %21 = vector.multi_reduction <maximumf>, %20, %cst_10 [1] : vector<8x8xf32> to vector<8xf32>
    %22 = vector.shape_cast %21 : vector<8xf32> to vector<8x1xf32>
    %23 = vector.broadcast %22 : vector<8x1xf32> to vector<8x8xf32>
    %24 = arith.subf %20, %23 : vector<8x8xf32>
    %25 = math.exp %24 : vector<8x8xf32>
    %cst_11 = arith.constant dense<0.000000e+00> : vector<8xf32>
    %26 = vector.multi_reduction <add>, %25, %cst_11 [1] : vector<8x8xf32> to vector<8xf32>
    %27 = vector.shape_cast %26 : vector<8xf32> to vector<8x1xf32>
    %cst_12 = arith.constant dense<0.000000e+00> : vector<8x8xf32>
    %28 = tpu.matmul %25, %18, %cst_12 {dimension_numbers = #tpu.dot_dimension_numbers<[1], [0], [0], [1], [0, 0, 1, 1], [], []>} : vector<8x8xf32>, vector<8x8xf32>, vector<8x8xf32> -> vector<8x8xf32>
    %29 = tpu.reciprocal %27 {approx = true} : vector<8x1xf32> -> vector<8x1xf32>
    %30 = vector.broadcast %29 : vector<8x1xf32> to vector<8x8xf32>
    %31 = arith.mulf %28, %30 : vector<8x8xf32>
    %32 = vector.extract_strided_slice %2 {offsets = [0, 0], sizes = [8, 32], strides = [1, 1]} : vector<32x32xf32> to vector<8x32xf32>
    %cst_13 = arith.constant dense<0.000000e+00> : vector<8x32xf32>
    %33 = tpu.matmul %31, %32, %cst_13 {dimension_numbers = #tpu.dot_dimension_numbers<[1], [0], [0], [1], [0, 0, 1, 1], [], []>} : vector<8x8xf32>, vector<8x32xf32>, vector<8x32xf32> -> vector<8x32xf32>
    %34 = arith.addf %15, %33 : vector<8x32xf32>
    %35 = vector.extract_strided_slice %6 {offsets = [0, 8], sizes = [8, 8], strides = [1, 1]} : vector<16x32xf32> to vector<8x8xf32>
    %36 = vector.extract_strided_slice %7 {offsets = [0, 8], sizes = [8, 8], strides = [1, 1]} : vector<16x32xf32> to vector<8x8xf32>
    %37 = vector.extract_strided_slice %8 {offsets = [0, 8], sizes = [8, 8], strides = [1, 1]} : vector<16x32xf32> to vector<8x8xf32>
    %cst_14 = arith.constant dense<0.000000e+00> : vector<8x8xf32>
    %38 = tpu.matmul %35, %36, %cst_14 {dimension_numbers = #tpu.dot_dimension_numbers<[1], [1], [0], [0], [0, 0, 1, 0], [], []>} : vector<8x8xf32>, vector<8x8xf32>, vector<8x8xf32> -> vector<8x8xf32>
    %39 = arith.addf %38, %14 : vector<8x8xf32>
    %cst_15 = arith.constant dense<0xFF800000> : vector<8xf32>
    %40 = vector.multi_reduction <maximumf>, %39, %cst_15 [1] : vector<8x8xf32> to vector<8xf32>
    %41 = vector.shape_cast %40 : vector<8xf32> to vector<8x1xf32>
    %42 = vector.broadcast %41 : vector<8x1xf32> to vector<8x8xf32>
    %43 = arith.subf %39, %42 : vector<8x8xf32>
    %44 = math.exp %43 : vector<8x8xf32>
    %cst_16 = arith.constant dense<0.000000e+00> : vector<8xf32>
    %45 = vector.multi_reduction <add>, %44, %cst_16 [1] : vector<8x8xf32> to vector<8xf32>
    %46 = vector.shape_cast %45 : vector<8xf32> to vector<8x1xf32>
    %cst_17 = arith.constant dense<0.000000e+00> : vector<8x8xf32>
    %47 = tpu.matmul %44, %37, %cst_17 {dimension_numbers = #tpu.dot_dimension_numbers<[1], [0], [0], [1], [0, 0, 1, 1], [], []>} : vector<8x8xf32>, vector<8x8xf32>, vector<8x8xf32> -> vector<8x8xf32>
    %48 = tpu.reciprocal %46 {approx = true} : vector<8x1xf32> -> vector<8x1xf32>
    %49 = vector.broadcast %48 : vector<8x1xf32> to vector<8x8xf32>
    %50 = arith.mulf %47, %49 : vector<8x8xf32>
    %51 = vector.extract_strided_slice %2 {offsets = [8, 0], sizes = [8, 32], strides = [1, 1]} : vector<32x32xf32> to vector<8x32xf32>
    %cst_18 = arith.constant dense<0.000000e+00> : vector<8x32xf32>
    %52 = tpu.matmul %50, %51, %cst_18 {dimension_numbers = #tpu.dot_dimension_numbers<[1], [0], [0], [1], [0, 0, 1, 1], [], []>} : vector<8x8xf32>, vector<8x32xf32>, vector<8x32xf32> -> vector<8x32xf32>
    %53 = arith.addf %34, %52 : vector<8x32xf32>
    %54 = vector.extract_strided_slice %6 {offsets = [0, 16], sizes = [8, 8], strides = [1, 1]} : vector<16x32xf32> to vector<8x8xf32>
    %55 = vector.extract_strided_slice %7 {offsets = [0, 16], sizes = [8, 8], strides = [1, 1]} : vector<16x32xf32> to vector<8x8xf32>
    %56 = vector.extract_strided_slice %8 {offsets = [0, 16], sizes = [8, 8], strides = [1, 1]} : vector<16x32xf32> to vector<8x8xf32>
    %cst_19 = arith.constant dense<0.000000e+00> : vector<8x8xf32>
    %57 = tpu.matmul %54, %55, %cst_19 {dimension_numbers = #tpu.dot_dimension_numbers<[1], [1], [0], [0], [0, 0, 1, 0], [], []>} : vector<8x8xf32>, vector<8x8xf32>, vector<8x8xf32> -> vector<8x8xf32>
    %58 = arith.addf %57, %14 : vector<8x8xf32>
    %cst_20 = arith.constant dense<0xFF800000> : vector<8xf32>
    %59 = vector.multi_reduction <maximumf>, %58, %cst_20 [1] : vector<8x8xf32> to vector<8xf32>
    %60 = vector.shape_cast %59 : vector<8xf32> to vector<8x1xf32>
    %61 = vector.broadcast %60 : vector<8x1xf32> to vector<8x8xf32>
    %62 = arith.subf %58, %61 : vector<8x8xf32>
    %63 = math.exp %62 : vector<8x8xf32>
    %cst_21 = arith.constant dense<0.000000e+00> : vector<8xf32>
    %64 = vector.multi_reduction <add>, %63, %cst_21 [1] : vector<8x8xf32> to vector<8xf32>
    %65 = vector.shape_cast %64 : vector<8xf32> to vector<8x1xf32>
    %cst_22 = arith.constant dense<0.000000e+00> : vector<8x8xf32>
    %66 = tpu.matmul %63, %56, %cst_22 {dimension_numbers = #tpu.dot_dimension_numbers<[1], [0], [0], [1], [0, 0, 1, 1], [], []>} : vector<8x8xf32>, vector<8x8xf32>, vector<8x8xf32> -> vector<8x8xf32>
    %67 = tpu.reciprocal %65 {approx = true} : vector<8x1xf32> -> vector<8x1xf32>
    %68 = vector.broadcast %67 : vector<8x1xf32> to vector<8x8xf32>
    %69 = arith.mulf %66, %68 : vector<8x8xf32>
    %70 = vector.extract_strided_slice %2 {offsets = [16, 0], sizes = [8, 32], strides = [1, 1]} : vector<32x32xf32> to vector<8x32xf32>
    %cst_23 = arith.constant dense<0.000000e+00> : vector<8x32xf32>
    %71 = tpu.matmul %69, %70, %cst_23 {dimension_numbers = #tpu.dot_dimension_numbers<[1], [0], [0], [1], [0, 0, 1, 1], [], []>} : vector<8x8xf32>, vector<8x32xf32>, vector<8x32xf32> -> vector<8x32xf32>
    %72 = arith.addf %53, %71 : vector<8x32xf32>
    %73 = vector.extract_strided_slice %6 {offsets = [0, 24], sizes = [8, 8], strides = [1, 1]} : vector<16x32xf32> to vector<8x8xf32>
    %74 = vector.extract_strided_slice %7 {offsets = [0, 24], sizes = [8, 8], strides = [1, 1]} : vector<16x32xf32> to vector<8x8xf32>
    %75 = vector.extract_strided_slice %8 {offsets = [0, 24], sizes = [8, 8], strides = [1, 1]} : vector<16x32xf32> to vector<8x8xf32>
    %cst_24 = arith.constant dense<0.000000e+00> : vector<8x8xf32>
    %76 = tpu.matmul %73, %74, %cst_24 {dimension_numbers = #tpu.dot_dimension_numbers<[1], [1], [0], [0], [0, 0, 1, 0], [], []>} : vector<8x8xf32>, vector<8x8xf32>, vector<8x8xf32> -> vector<8x8xf32>
    %77 = arith.addf %76, %14 : vector<8x8xf32>
    %cst_25 = arith.constant dense<0xFF800000> : vector<8xf32>
    %78 = vector.multi_reduction <maximumf>, %77, %cst_25 [1] : vector<8x8xf32> to vector<8xf32>
    %79 = vector.shape_cast %78 : vector<8xf32> to vector<8x1xf32>
    %80 = vector.broadcast %79 : vector<8x1xf32> to vector<8x8xf32>
    %81 = arith.subf %77, %80 : vector<8x8xf32>
    %82 = math.exp %81 : vector<8x8xf32>
    %cst_26 = arith.constant dense<0.000000e+00> : vector<8xf32>
    %83 = vector.multi_reduction <add>, %82, %cst_26 [1] : vector<8x8xf32> to vector<8xf32>
    %84 = vector.shape_cast %83 : vector<8xf32> to vector<8x1xf32>
    %cst_27 = arith.constant dense<0.000000e+00> : vector<8x8xf32>
    %85 = tpu.matmul %82, %75, %cst_27 {dimension_numbers = #tpu.dot_dimension_numbers<[1], [0], [0], [1], [0, 0, 1, 1], [], []>} : vector<8x8xf32>, vector<8x8xf32>, vector<8x8xf32> -> vector<8x8xf32>
    %86 = tpu.reciprocal %84 {approx = true} : vector<8x1xf32> -> vector<8x1xf32>
    %87 = vector.broadcast %86 : vector<8x1xf32> to vector<8x8xf32>
    %88 = arith.mulf %85, %87 : vector<8x8xf32>
    %89 = vector.extract_strided_slice %2 {offsets = [24, 0], sizes = [8, 32], strides = [1, 1]} : vector<32x32xf32> to vector<8x32xf32>
    %cst_28 = arith.constant dense<0.000000e+00> : vector<8x32xf32>
    %90 = tpu.matmul %88, %89, %cst_28 {dimension_numbers = #tpu.dot_dimension_numbers<[1], [0], [0], [1], [0, 0, 1, 1], [], []>} : vector<8x8xf32>, vector<8x32xf32>, vector<8x32xf32> -> vector<8x32xf32>
    %91 = arith.addf %72, %90 : vector<8x32xf32>
    %c0_29 = arith.constant 0 : index
    %c0_30 = arith.constant 0 : index
    %92 = vector.load %arg4[%c0_29, %c0_30] : memref<16x32xf32, #tpu.memory_space<vmem>>, vector<8x32xf32>
    tpu.vector_store %arg4[%c0_29, %c0_30], %91 {strides = array<i32>} : memref<16x32xf32, #tpu.memory_space<vmem>>, vector<8x32xf32>,
    %cst_31 = arith.constant 0.000000e+00 : f32
    %93 = vector.broadcast %cst_31 : f32 to vector<8x32xf32>
    %94 = vector.extract_strided_slice %6 {offsets = [8, 0], sizes = [8, 8], strides = [1, 1]} : vector<16x32xf32> to vector<8x8xf32>
    %95 = vector.extract_strided_slice %7 {offsets = [8, 0], sizes = [8, 8], strides = [1, 1]} : vector<16x32xf32> to vector<8x8xf32>
    %96 = vector.extract_strided_slice %8 {offsets = [8, 0], sizes = [8, 8], strides = [1, 1]} : vector<16x32xf32> to vector<8x8xf32>
    %cst_32 = arith.constant dense<0.000000e+00> : vector<8x8xf32>
    %97 = tpu.matmul %94, %95, %cst_32 {dimension_numbers = #tpu.dot_dimension_numbers<[1], [1], [0], [0], [0, 0, 1, 0], [], []>} : vector<8x8xf32>, vector<8x8xf32>, vector<8x8xf32> -> vector<8x8xf32>
    %98 = arith.addf %97, %14 : vector<8x8xf32>
    %cst_33 = arith.constant dense<0xFF800000> : vector<8xf32>
    %99 = vector.multi_reduction <maximumf>, %98, %cst_33 [1] : vector<8x8xf32> to vector<8xf32>
    %100 = vector.shape_cast %99 : vector<8xf32> to vector<8x1xf32>
    %101 = vector.broadcast %100 : vector<8x1xf32> to vector<8x8xf32>
    %102 = arith.subf %98, %101 : vector<8x8xf32>
    %103 = math.exp %102 : vector<8x8xf32>
    %cst_34 = arith.constant dense<0.000000e+00> : vector<8xf32>
    %104 = vector.multi_reduction <add>, %103, %cst_34 [1] : vector<8x8xf32> to vector<8xf32>
    %105 = vector.shape_cast %104 : vector<8xf32> to vector<8x1xf32>
    %cst_35 = arith.constant dense<0.000000e+00> : vector<8x8xf32>
    %106 = tpu.matmul %103, %96, %cst_35 {dimension_numbers = #tpu.dot_dimension_numbers<[1], [0], [0], [1], [0, 0, 1, 1], [], []>} : vector<8x8xf32>, vector<8x8xf32>, vector<8x8xf32> -> vector<8x8xf32>
    %107 = tpu.reciprocal %105 {approx = true} : vector<8x1xf32> -> vector<8x1xf32>
    %108 = vector.broadcast %107 : vector<8x1xf32> to vector<8x8xf32>
    %109 = arith.mulf %106, %108 : vector<8x8xf32>
    %110 = vector.extract_strided_slice %2 {offsets = [0, 0], sizes = [8, 32], strides = [1, 1]} : vector<32x32xf32> to vector<8x32xf32>
    %cst_36 = arith.constant dense<0.000000e+00> : vector<8x32xf32>
    %111 = tpu.matmul %109, %110, %cst_36 {dimension_numbers = #tpu.dot_dimension_numbers<[1], [0], [0], [1], [0, 0, 1, 1], [], []>} : vector<8x8xf32>, vector<8x32xf32>, vector<8x32xf32> -> vector<8x32xf32>
    %112 = arith.addf %93, %111 : vector<8x32xf32>
    %113 = vector.extract_strided_slice %6 {offsets = [8, 8], sizes = [8, 8], strides = [1, 1]} : vector<16x32xf32> to vector<8x8xf32>
    %114 = vector.extract_strided_slice %7 {offsets = [8, 8], sizes = [8, 8], strides = [1, 1]} : vector<16x32xf32> to vector<8x8xf32>
    %115 = vector.extract_strided_slice %8 {offsets = [8, 8], sizes = [8, 8], strides = [1, 1]} : vector<16x32xf32> to vector<8x8xf32>
    %cst_37 = arith.constant dense<0.000000e+00> : vector<8x8xf32>
    %116 = tpu.matmul %113, %114, %cst_37 {dimension_numbers = #tpu.dot_dimension_numbers<[1], [1], [0], [0], [0, 0, 1, 0], [], []>} : vector<8x8xf32>, vector<8x8xf32>, vector<8x8xf32> -> vector<8x8xf32>
    %117 = arith.addf %116, %14 : vector<8x8xf32>
    %cst_38 = arith.constant dense<0xFF800000> : vector<8xf32>
    %118 = vector.multi_reduction <maximumf>, %117, %cst_38 [1] : vector<8x8xf32> to vector<8xf32>
    %119 = vector.shape_cast %118 : vector<8xf32> to vector<8x1xf32>
    %120 = vector.broadcast %119 : vector<8x1xf32> to vector<8x8xf32>
    %121 = arith.subf %117, %120 : vector<8x8xf32>
    %122 = math.exp %121 : vector<8x8xf32>
    %cst_39 = arith.constant dense<0.000000e+00> : vector<8xf32>
    %123 = vector.multi_reduction <add>, %122, %cst_39 [1] : vector<8x8xf32> to vector<8xf32>
    %124 = vector.shape_cast %123 : vector<8xf32> to vector<8x1xf32>
    %cst_40 = arith.constant dense<0.000000e+00> : vector<8x8xf32>
    %125 = tpu.matmul %122, %115, %cst_40 {dimension_numbers = #tpu.dot_dimension_numbers<[1], [0], [0], [1], [0, 0, 1, 1], [], []>} : vector<8x8xf32>, vector<8x8xf32>, vector<8x8xf32> -> vector<8x8xf32>
    %126 = tpu.reciprocal %124 {approx = true} : vector<8x1xf32> -> vector<8x1xf32>
    %127 = vector.broadcast %126 : vector<8x1xf32> to vector<8x8xf32>
    %128 = arith.mulf %125, %127 : vector<8x8xf32>
    %129 = vector.extract_strided_slice %2 {offsets = [8, 0], sizes = [8, 32], strides = [1, 1]} : vector<32x32xf32> to vector<8x32xf32>
    %cst_41 = arith.constant dense<0.000000e+00> : vector<8x32xf32>
    %130 = tpu.matmul %128, %129, %cst_41 {dimension_numbers = #tpu.dot_dimension_numbers<[1], [0], [0], [1], [0, 0, 1, 1], [], []>} : vector<8x8xf32>, vector<8x32xf32>, vector<8x32xf32> -> vector<8x32xf32>
    %131 = arith.addf %112, %130 : vector<8x32xf32>
    %132 = vector.extract_strided_slice %6 {offsets = [8, 16], sizes = [8, 8], strides = [1, 1]} : vector<16x32xf32> to vector<8x8xf32>
    %133 = vector.extract_strided_slice %7 {offsets = [8, 16], sizes = [8, 8], strides = [1, 1]} : vector<16x32xf32> to vector<8x8xf32>
    %134 = vector.extract_strided_slice %8 {offsets = [8, 16], sizes = [8, 8], strides = [1, 1]} : vector<16x32xf32> to vector<8x8xf32>
    %cst_42 = arith.constant dense<0.000000e+00> : vector<8x8xf32>
    %135 = tpu.matmul %132, %133, %cst_42 {dimension_numbers = #tpu.dot_dimension_numbers<[1], [1], [0], [0], [0, 0, 1, 0], [], []>} : vector<8x8xf32>, vector<8x8xf32>, vector<8x8xf32> -> vector<8x8xf32>
    %136 = arith.addf %135, %14 : vector<8x8xf32>
    %cst_43 = arith.constant dense<0xFF800000> : vector<8xf32>
    %137 = vector.multi_reduction <maximumf>, %136, %cst_43 [1] : vector<8x8xf32> to vector<8xf32>
    %138 = vector.shape_cast %137 : vector<8xf32> to vector<8x1xf32>
    %139 = vector.broadcast %138 : vector<8x1xf32> to vector<8x8xf32>
    %140 = arith.subf %136, %139 : vector<8x8xf32>
    %141 = math.exp %140 : vector<8x8xf32>
    %cst_44 = arith.constant dense<0.000000e+00> : vector<8xf32>
    %142 = vector.multi_reduction <add>, %141, %cst_44 [1] : vector<8x8xf32> to vector<8xf32>
    %143 = vector.shape_cast %142 : vector<8xf32> to vector<8x1xf32>
    %cst_45 = arith.constant dense<0.000000e+00> : vector<8x8xf32>
    %144 = tpu.matmul %141, %134, %cst_45 {dimension_numbers = #tpu.dot_dimension_numbers<[1], [0], [0], [1], [0, 0, 1, 1], [], []>} : vector<8x8xf32>, vector<8x8xf32>, vector<8x8xf32> -> vector<8x8xf32>
    %145 = tpu.reciprocal %143 {approx = true} : vector<8x1xf32> -> vector<8x1xf32>
    %146 = vector.broadcast %145 : vector<8x1xf32> to vector<8x8xf32>
    %147 = arith.mulf %144, %146 : vector<8x8xf32>
    %148 = vector.extract_strided_slice %2 {offsets = [16, 0], sizes = [8, 32], strides = [1, 1]} : vector<32x32xf32> to vector<8x32xf32>
    %cst_46 = arith.constant dense<0.000000e+00> : vector<8x32xf32>
    %149 = tpu.matmul %147, %148, %cst_46 {dimension_numbers = #tpu.dot_dimension_numbers<[1], [0], [0], [1], [0, 0, 1, 1], [], []>} : vector<8x8xf32>, vector<8x32xf32>, vector<8x32xf32> -> vector<8x32xf32>
    %150 = arith.addf %131, %149 : vector<8x32xf32>
    %151 = vector.extract_strided_slice %6 {offsets = [8, 24], sizes = [8, 8], strides = [1, 1]} : vector<16x32xf32> to vector<8x8xf32>
    %152 = vector.extract_strided_slice %7 {offsets = [8, 24], sizes = [8, 8], strides = [1, 1]} : vector<16x32xf32> to vector<8x8xf32>
    %153 = vector.extract_strided_slice %8 {offsets = [8, 24], sizes = [8, 8], strides = [1, 1]} : vector<16x32xf32> to vector<8x8xf32>
    %cst_47 = arith.constant dense<0.000000e+00> : vector<8x8xf32>
    %154 = tpu.matmul %151, %152, %cst_47 {dimension_numbers = #tpu.dot_dimension_numbers<[1], [1], [0], [0], [0, 0, 1, 0], [], []>} : vector<8x8xf32>, vector<8x8xf32>, vector<8x8xf32> -> vector<8x8xf32>
    %155 = arith.addf %154, %14 : vector<8x8xf32>
    %cst_48 = arith.constant dense<0xFF800000> : vector<8xf32>
    %156 = vector.multi_reduction <maximumf>, %155, %cst_48 [1] : vector<8x8xf32> to vector<8xf32>
    %157 = vector.shape_cast %156 : vector<8xf32> to vector<8x1xf32>
    %158 = vector.broadcast %157 : vector<8x1xf32> to vector<8x8xf32>
    %159 = arith.subf %155, %158 : vector<8x8xf32>
    %160 = math.exp %159 : vector<8x8xf32>
    %cst_49 = arith.constant dense<0.000000e+00> : vector<8xf32>
    %161 = vector.multi_reduction <add>, %160, %cst_49 [1] : vector<8x8xf32> to vector<8xf32>
    %162 = vector.shape_cast %161 : vector<8xf32> to vector<8x1xf32>
    %cst_50 = arith.constant dense<0.000000e+00> : vector<8x8xf32>
    %163 = tpu.matmul %160, %153, %cst_50 {dimension_numbers = #tpu.dot_dimension_numbers<[1], [0], [0], [1], [0, 0, 1, 1], [], []>} : vector<8x8xf32>, vector<8x8xf32>, vector<8x8xf32> -> vector<8x8xf32>
    %164 = tpu.reciprocal %162 {approx = true} : vector<8x1xf32> -> vector<8x1xf32>
    %165 = vector.broadcast %164 : vector<8x1xf32> to vector<8x8xf32>
    %166 = arith.mulf %163, %165 : vector<8x8xf32>
    %167 = vector.extract_strided_slice %2 {offsets = [24, 0], sizes = [8, 32], strides = [1, 1]} : vector<32x32xf32> to vector<8x32xf32>
    %cst_51 = arith.constant dense<0.000000e+00> : vector<8x32xf32>
    %168 = tpu.matmul %166, %167, %cst_51 {dimension_numbers = #tpu.dot_dimension_numbers<[1], [0], [0], [1], [0, 0, 1, 1], [], []>} : vector<8x8xf32>, vector<8x32xf32>, vector<8x32xf32> -> vector<8x32xf32>
    %169 = arith.addf %150, %168 : vector<8x32xf32>
    %c8 = arith.constant 8 : index
    %c0_52 = arith.constant 0 : index
    %170 = vector.load %arg4[%c8, %c0_52] : memref<16x32xf32, #tpu.memory_space<vmem>>, vector<8x32xf32>
    tpu.vector_store %arg4[%c8, %c0_52], %169 {strides = array<i32>} : memref<16x32xf32, #tpu.memory_space<vmem>>, vector<8x32xf32>,
    return
  }
  func.func @transform_0(%arg0: i32) -> (i32, i32) {
    %c0_i32 = arith.constant 0 : i32
    %c0_i32_0 = arith.constant 0 : i32
    %c0_i32_1 = arith.constant 0 : i32
    return %c0_i32, %c0_i32_0 : i32, i32
  }
  func.func @transform_1(%arg0: i32) -> (i32, i32) {
    %c0_i32 = arith.constant 0 : i32
    %c0_i32_0 = arith.constant 0 : i32
    %c0_i32_1 = arith.constant 0 : i32
    return %c0_i32, %c0_i32_0 : i32, i32
  }
  func.func @transform_2(%arg0: i32) -> (i32, i32) {
    %c0_i32 = arith.constant 0 : i32
    %c0_i32_0 = arith.constant 0 : i32
    %c0_i32_1 = arith.constant 0 : i32
    return %c0_i32, %c0_i32_0 : i32, i32
  }
  func.func @transform_3(%arg0: i32) -> (i32, i32) {
    %c0_i32 = arith.constant 0 : i32
    %c0_i32_0 = arith.constant 0 : i32
    %c0_i32_1 = arith.constant 0 : i32
    return %c0_i32, %c0_i32_0 : i32, i32
  }
}

</mosaic_0001>

<llo_original>
// kernel: tpu_custom_call.1
$region0: #{tpu_custom_call.1}
  #allocation0 [shape = 'u32[]', space=smem, size = 0x4, offset = 0x4, fixed_abs, tag = 'smem constant byte address 0x4 - core index']
  #allocation1 [shape = 'u32[72,128]{1,0:T(1,128)}', space=vmem, size = 0x9000, scoped, tag = 'internal scratch']
  %s0 = inlined_call_operand.hbm [shape: f32[16,32], index: 0, kind: input, shape index: {}]
  %s1 = inlined_call_operand.hbm [shape: f32[32,96], index: 1, kind: input, shape index: {}]
  %s2 = inlined_call_operand.hbm [shape: f32[32,32], index: 2, kind: input, shape index: {}]
  %s3 = inlined_call_operand.hbm [shape: f32[16,32], index: 3, kind: output, shape index: {}]
  %s4 = sld [smem:[#allocation0]]
  $region34: #{tpu_custom_call.1} parent=0
    _
  %s6 = ssub.s32 1, %s4
  %s7 = scalar_select 0, %s6, %s4
  $region1: #{tpu_custom_call.1} parent=0
    #allocation2 [shape = 'u8[8192]{0}', space=vmem, size = 0x2000, scoped, tag = 'input window, operand 0, single buffered']
    #allocation3 [shape = 's32[1]{0}', space=sflag, size = 0x4, scoped, tag = 'scoped memory for tpu_custom_call.1']
    #allocation4 [shape = 's32[1]{0}', space=sflag, size = 0x4, scoped, tag = 'scoped memory for tpu_custom_call.1']
    #allocation5 [shape = 'u8[16384]{0}', space=vmem, size = 0x4000, scoped, tag = 'input window, operand 1, single buffered']
    #allocation6 [shape = 's32[1]{0}', space=sflag, size = 0x4, scoped, tag = 'scoped memory for tpu_custom_call.1']
    #allocation7 [shape = 'u8[16384]{0}', space=vmem, size = 0x4000, scoped, tag = 'input window, operand 2, single buffered']
    #allocation8 [shape = 'u8[8192]{0}', space=vmem, size = 0x2000, scoped, tag = 'output window, operand 0, single buffered']
    %8 = vsyncpa [#allocation3], 0
    %9 = vsyncpa [#allocation6], 0
    %10 = vsyncpa [#allocation4], 0
    // Predicated region
    $region2: #{tpu_custom_call.1} parent=1 // pred_check
      _
    $region3: #{tpu_custom_call.1} parent=1 // pred_check_branch
      %12 = sbr.rel (0) target = $region5
    $region4: #{tpu_custom_call.1} parent=1 // pred_region
      %14 = vsyncadd [#allocation3], 0
      %s15 = sshll.u32 %s0, 4
      %s16 = int_to_ptr.hbm [resolvable:$true] %s15
      %s17 = sshll.u32 [#allocation2], 4
      %s18 = int_to_ptr.vmem [resolvable:$true] %s17
      %23 = dma.hbm_to_vmem [thread:$0]  %s16, 256, %s18, [#allocation3], 128, 128, 8
    $region5: #{tpu_custom_call.1} parent=1 // pred_fallthru
      _
    // Predicated region
    $region6: #{tpu_custom_call.1} parent=1 // pred_check
      _
    $region7: #{tpu_custom_call.1} parent=1 // pred_check_branch
      %25 = sbr.rel (0) target = $region9
    $region8: #{tpu_custom_call.1} parent=1 // pred_region
      %27 = vsyncadd [#allocation6], 0
      %s28 = sshll.u32 %s1, 4
      %s29 = int_to_ptr.hbm [resolvable:$true] %s28
      %s30 = sshll.u32 [#allocation5], 4
      %s31 = int_to_ptr.vmem [resolvable:$true] %s30
      %36 = dma.hbm_to_vmem [thread:$0]  %s29, 512, %s31, [#allocation6], 128, 128, 8
    $region9: #{tpu_custom_call.1} parent=1 // pred_fallthru
      _
    // Predicated region
    $region10: #{tpu_custom_call.1} parent=1 // pred_check
      _
    $region11: #{tpu_custom_call.1} parent=1 // pred_check_branch
      %38 = sbr.rel (0) target = $region13
    $region12: #{tpu_custom_call.1} parent=1 // pred_region
      %40 = vsyncadd [#allocation6], 0
      %s41 = sshll.u32 %s2, 4
      %s42 = int_to_ptr.hbm [resolvable:$true] %s41
      %s43 = sshll.u32 [#allocation7], 4
      %s44 = int_to_ptr.vmem [resolvable:$true] %s43
      %49 = dma.hbm_to_vmem [thread:$0]  %s42, 512, %s44, [#allocation6], 128, 128, 8
    $region13: #{tpu_custom_call.1} parent=1 // pred_fallthru
      _
    // Predicated region
    $region14: #{tpu_custom_call.1} parent=1 // pred_check
      _
    $region15: #{tpu_custom_call.1} parent=1 // pred_check_branch
      %51 = sbr.rel (0) target = $region17
    $region16: #{tpu_custom_call.1} parent=1 // pred_region
      %53 = dma.done [#allocation3], 256
    $region17: #{tpu_custom_call.1} parent=1 // pred_fallthru
      _
    // Predicated region
    $region18: #{tpu_custom_call.1} parent=1 // pred_check
      _
    $region19: #{tpu_custom_call.1} parent=1 // pred_check_branch
      %55 = sbr.rel (0) target = $region21
    $region20: #{tpu_custom_call.1} parent=1 // pred_region
      %57 = dma.done [#allocation6], 512
    $region21: #{tpu_custom_call.1} parent=1 // pred_fallthru
      _
    // Predicated region
    $region22: #{tpu_custom_call.1} parent=1 // pred_check
      _
    $region23: #{tpu_custom_call.1} parent=1 // pred_check_branch
      %59 = sbr.rel (0) target = $region25
    $region24: #{tpu_custom_call.1} parent=1 // pred_region
      %61 = dma.done [#allocation6], 512
    $region25: #{tpu_custom_call.1} parent=1 // pred_fallthru
      _
    %v62 = vld [vmem:[#allocation2] sm:$0xff]
    %v63 = vld [vmem:[#allocation2 + $0x8] sm:$0xff]
    %v64 = vld [vmem:[#allocation5] sm:$0xff]
    %v65 = vld [vmem:[#allocation5 + $0x8] sm:$0xff]
    %v66 = vld [vmem:[#allocation5 + $0x10] sm:$0xff]
    %v67 = vld [vmem:[#allocation5 + $0x18] sm:$0xff]
    %v68 = vld [vmem:[#allocation7] sm:$0xff]
    %v69 = vld [vmem:[#allocation7 + $0x8] sm:$0xff]
    %v70 = vld [vmem:[#allocation7 + $0x10] sm:$0xff]
    %v71 = vld [vmem:[#allocation7 + $0x18] sm:$0xff]
    %vm72 = vcmask 261120
    %v74 = vsel %vm72, %v62, 0
    %v77 = vsel %vm72, %v63, 0
    %79 = vmatpush.msra.mxu0 0.0
    %80 = vmatpush.msra.mxu0 0.0
    %81 = vmatpush.msra.mxu0 0.0
    %82 = vmatpush.msra.mxu0 0.0
    %83 = vmatpush.msra.mxu0 0.0
    %84 = vmatpush.msra.mxu0 0.0
    %85 = vmatpush.msra.mxu0 0.0
    %86 = vmatpush.msra.mxu0 0.0
    %87 = vmatpush.msra.mxu0 0.0
    %88 = vmatpush.msra.mxu0 0.0
    %89 = vmatpush.msra.mxu0 0.0
    %90 = vmatpush.msra.mxu0 0.0
    %91 = vmatpush.msra.mxu0 %v67
    %92 = vmatpush.msra.mxu0 %v66
    %93 = vmatpush.msra.mxu0 %v65
    %94 = vmatpush.msra.mxu0 %v64
    %95 = vmatmul.f32.gmra.mxu0 %v74
    %v96 = vpop.f32.mrf.mxu0
    %v97 = vadd.f32 0.0, %v96
    %98 = vmatmul.f32.gmra.mxu0 %v77
    %v99 = vpop.f32.mrf.mxu0
    %v100 = vadd.f32 0.0, %v99
    %101 = vdwg.mxu0
    %v102 = vmul.f32 %v97, 0.35355338
    %v103 = vmul.f32 %v100, 0.35355338
    %v104 = vlaneseq
    %v105 = vshrl.u32 %v104, 7
    %v106 = vlaneseq
    %v107 = vand.u32 %v106, 127
    %vm108 = vcmp.gt.s32.totalorder %v107, %v105
    %v109 = vsel %vm108, -1e+30, 0.0
    %111 = vrot.lane.b32.xlu0 %v97, 96
    %v112 = vpop.permute.xlu0 %111
    %vm113 = vcmask 64512
    %v115 = vsel %vm113, %v102, 0
    %v117 = vsel %vm113, %v112, 0
    %119 = vmatpush.xpose.msra.mxu0 0.0
    %120 = vmatpush.xpose.msra.mxu0 0.0
    %121 = vmatpush.xpose.msra.mxu0 0.0
    %122 = vmatpush.xpose.msra.mxu0 0.0
    %123 = vmatpush.xpose.msra.mxu0 0.0
    %124 = vmatpush.xpose.msra.mxu0 0.0
    %125 = vmatpush.xpose.msra.mxu0 0.0
    %126 = vmatpush.xpose.msra.mxu0 0.0
    %127 = vmatpush.xpose.msra.mxu0 0.0
    %128 = vmatpush.xpose.msra.mxu0 0.0
    %129 = vmatpush.xpose.msra.mxu0 0.0
    %130 = vmatpush.xpose.msra.mxu0 0.0
    %131 = vmatpush.xpose.msra.mxu0 0.0
    %132 = vmatpush.xpose.msra.mxu0 0.0
    %133 = vmatpush.xpose.msra.mxu0 0.0
    %134 = vmatpush.xpose.msra.mxu0 %v117
    %135 = vmatmul.f32.gmra.mxu0 %v115
    %v136 = vpop.f32.mrf.mxu0
    %v137 = vadd.f32 %v109, %v136
    %138 = vdwg.mxu0
    %v139 = vsel %vm113, %v137, -inf
    %140 = vmax.xlane.f32.xlu0 %v139
    %v141 = vpop.xlane.xlu0 %140
    %v142 = vsub.f32 %v137, %v141
    %v143 = vmul.f32 %v142, 1.442695
    %v144 = vpow.pop %v143
    %v145 = vsel %vm113, %v144, 0.0
    %146 = vadd.xlane.f32.xlu0 %v145
    %v147 = vpop.xlane.xlu0 %146
    %148 = vrot.lane.b32.xlu0 %v97, 64
    %v149 = vpop.permute.xlu0 %148
    %v152 = vsel %vm113, %v144, 0
    %154 = vmatpush.msra.mxu0 0.0
    %155 = vmatpush.msra.mxu0 0.0
    %156 = vmatpush.msra.mxu0 0.0
    %157 = vmatpush.msra.mxu0 0.0
    %158 = vmatpush.msra.mxu0 0.0
    %159 = vmatpush.msra.mxu0 0.0
    %160 = vmatpush.msra.mxu0 0.0
    %161 = vmatpush.msra.mxu0 0.0
    %162 = vmatpush.msra.mxu0 0.0
    %163 = vmatpush.msra.mxu0 0.0
    %164 = vmatpush.msra.mxu0 0.0
    %165 = vmatpush.msra.mxu0 0.0
    %166 = vmatpush.msra.mxu0 0.0
    %167 = vmatpush.msra.mxu0 0.0
    %168 = vmatpush.msra.mxu0 0.0
    %169 = vmatpush.msra.mxu0 %v149
    %170 = vmatmul.f32.gmra.mxu0 %v152
    %v171 = vpop.f32.mrf.mxu0
    %v172 = vadd.f32 0.0, %v171
    %173 = vdwg.mxu0
    %v174 = vrcp.pop %v147
    %v175 = vmul.f32 %v172, %v174
    %176 = vrot.lane.b32.xlu0 %v102, 120
    %v177 = vpop.permute.xlu0 %176
    %178 = vrot.lane.b32.xlu0 %v97, 88
    %v179 = vpop.permute.xlu0 %178
    %v180 = vsel %vm113, %v177, 0
    %v182 = vsel %vm113, %v179, 0
    %184 = vmatpush.xpose.msra.mxu0 0.0
    %185 = vmatpush.xpose.msra.mxu0 0.0
    %186 = vmatpush.xpose.msra.mxu0 0.0
    %187 = vmatpush.xpose.msra.mxu0 0.0
    %188 = vmatpush.xpose.msra.mxu0 0.0
    %189 = vmatpush.xpose.msra.mxu0 0.0
    %190 = vmatpush.xpose.msra.mxu0 0.0
    %191 = vmatpush.xpose.msra.mxu0 0.0
    %192 = vmatpush.xpose.msra.mxu0 0.0
    %193 = vmatpush.xpose.msra.mxu0 0.0
    %194 = vmatpush.xpose.msra.mxu0 0.0
    %195 = vmatpush.xpose.msra.mxu0 0.0
    %196 = vmatpush.xpose.msra.mxu0 0.0
    %197 = vmatpush.xpose.msra.mxu0 0.0
    %198 = vmatpush.xpose.msra.mxu0 0.0
    %199 = vmatpush.xpose.msra.mxu0 %v182
    %200 = vmatmul.f32.gmra.mxu0 %v180
    %v201 = vpop.f32.mrf.mxu0
    %v202 = vadd.f32 %v109, %v201
    %203 = vdwg.mxu0
    %v204 = vsel %vm113, %v202, -inf
    %205 = vmax.xlane.f32.xlu0 %v204
    %v206 = vpop.xlane.xlu0 %205
    %v207 = vsub.f32 %v202, %v206
    %v208 = vmul.f32 %v207, 1.442695
    %v209 = vpow.pop %v208
    %v210 = vsel %vm113, %v209, 0.0
    %211 = vadd.xlane.f32.xlu0 %v210
    %v212 = vpop.xlane.xlu0 %211
    %213 = vrot.lane.b32.xlu0 %v97, 56
    %v214 = vpop.permute.xlu0 %213
    %v217 = vsel %vm113, %v209, 0
    %219 = vmatpush.msra.mxu0 0.0
    %220 = vmatpush.msra.mxu0 0.0
    %221 = vmatpush.msra.mxu0 0.0
    %222 = vmatpush.msra.mxu0 0.0
    %223 = vmatpush.msra.mxu0 0.0
    %224 = vmatpush.msra.mxu0 0.0
    %225 = vmatpush.msra.mxu0 0.0
    %226 = vmatpush.msra.mxu0 0.0
    %227 = vmatpush.msra.mxu0 0.0
    %228 = vmatpush.msra.mxu0 0.0
    %229 = vmatpush.msra.mxu0 0.0
    %230 = vmatpush.msra.mxu0 0.0
    %231 = vmatpush.msra.mxu0 0.0
    %232 = vmatpush.msra.mxu0 0.0
    %233 = vmatpush.msra.mxu0 0.0
    %234 = vmatpush.msra.mxu0 %v214
    %235 = vmatmul.f32.gmra.mxu0 %v217
    %v236 = vpop.f32.mrf.mxu0
    %v237 = vadd.f32 0.0, %v236
    %238 = vdwg.mxu0
    %v239 = vrcp.pop %v212
    %v240 = vmul.f32 %v237, %v239
    %v242 = vsel %vm113, %v240, 0
    %244 = vmatpush.msra.mxu0 0.0
    %245 = vmatpush.msra.mxu0 0.0
    %246 = vmatpush.msra.mxu0 0.0
    %247 = vmatpush.msra.mxu0 0.0
    %248 = vmatpush.msra.mxu0 0.0
    %249 = vmatpush.msra.mxu0 0.0
    %250 = vmatpush.msra.mxu0 0.0
    %251 = vmatpush.msra.mxu0 0.0
    %252 = vmatpush.msra.mxu0 0.0
    %253 = vmatpush.msra.mxu0 0.0
    %254 = vmatpush.msra.mxu0 0.0
    %255 = vmatpush.msra.mxu0 0.0
    %256 = vmatpush.msra.mxu0 0.0
    %257 = vmatpush.msra.mxu0 0.0
    %258 = vmatpush.msra.mxu0 0.0
    %259 = vmatpush.msra.mxu0 %v69
    %260 = vmatmul.f32.gmra.mxu0 %v242
    %v261 = vpop.f32.mrf.mxu0
    %v262 = vadd.f32 0.0, %v261
    %263 = vdwg.mxu0
    %v265 = vsel %vm113, %v175, 0
    %267 = vmatpush.msra.mxu0 0.0
    %268 = vmatpush.msra.mxu0 0.0
    %269 = vmatpush.msra.mxu0 0.0
    %270 = vmatpush.msra.mxu0 0.0
    %271 = vmatpush.msra.mxu0 0.0
    %272 = vmatpush.msra.mxu0 0.0
    %273 = vmatpush.msra.mxu0 0.0
    %274 = vmatpush.msra.mxu0 0.0
    %275 = vmatpush.msra.mxu0 0.0
    %276 = vmatpush.msra.mxu0 0.0
    %277 = vmatpush.msra.mxu0 0.0
    %278 = vmatpush.msra.mxu0 0.0
    %279 = vmatpush.msra.mxu0 0.0
    %280 = vmatpush.msra.mxu0 0.0
    %281 = vmatpush.msra.mxu0 0.0
    %282 = vmatpush.msra.mxu0 %v68
    %283 = vmatmul.f32.gmra.mxu0 %v265
    %v284 = vpop.f32.mrf.mxu0
    %v285 = vadd.f32 %v262, %v284
    %286 = vdwg.mxu0
    %287 = vrot.lane.b32.xlu0 %v102, 112
    %v288 = vpop.permute.xlu0 %287
    %289 = vrot.lane.b32.xlu0 %v97, 80
    %v290 = vpop.permute.xlu0 %289
    %v291 = vsel %vm113, %v288, 0
    %v293 = vsel %vm113, %v290, 0
    %295 = vmatpush.xpose.msra.mxu0 0.0
    %296 = vmatpush.xpose.msra.mxu0 0.0
    %297 = vmatpush.xpose.msra.mxu0 0.0
    %298 = vmatpush.xpose.msra.mxu0 0.0
    %299 = vmatpush.xpose.msra.mxu0 0.0
    %300 = vmatpush.xpose.msra.mxu0 0.0
    %301 = vmatpush.xpose.msra.mxu0 0.0
    %302 = vmatpush.xpose.msra.mxu0 0.0
    %303 = vmatpush.xpose.msra.mxu0 0.0
    %304 = vmatpush.xpose.msra.mxu0 0.0
    %305 = vmatpush.xpose.msra.mxu0 0.0
    %306 = vmatpush.xpose.msra.mxu0 0.0
    %307 = vmatpush.xpose.msra.mxu0 0.0
    %308 = vmatpush.xpose.msra.mxu0 0.0
    %309 = vmatpush.xpose.msra.mxu0 0.0
    %310 = vmatpush.xpose.msra.mxu0 %v293
    %311 = vmatmul.f32.gmra.mxu0 %v291
    %v312 = vpop.f32.mrf.mxu0
    %v313 = vadd.f32 %v109, %v312
    %314 = vdwg.mxu0
    %v315 = vsel %vm113, %v313, -inf
    %316 = vmax.xlane.f32.xlu0 %v315
    %v317 = vpop.xlane.xlu0 %316
    %v318 = vsub.f32 %v313, %v317
    %v319 = vmul.f32 %v318, 1.442695
    %v320 = vpow.pop %v319
    %v321 = vsel %vm113, %v320, 0.0
    %322 = vadd.xlane.f32.xlu0 %v321
    %v323 = vpop.xlane.xlu0 %322
    %324 = vrot.lane.b32.xlu0 %v97, 48
    %v325 = vpop.permute.xlu0 %324
    %v328 = vsel %vm113, %v320, 0
    %330 = vmatpush.msra.mxu0 0.0
    %331 = vmatpush.msra.mxu0 0.0
    %332 = vmatpush.msra.mxu0 0.0
    %333 = vmatpush.msra.mxu0 0.0
    %334 = vmatpush.msra.mxu0 0.0
    %335 = vmatpush.msra.mxu0 0.0
    %336 = vmatpush.msra.mxu0 0.0
    %337 = vmatpush.msra.mxu0 0.0
    %338 = vmatpush.msra.mxu0 0.0
    %339 = vmatpush.msra.mxu0 0.0
    %340 = vmatpush.msra.mxu0 0.0
    %341 = vmatpush.msra.mxu0 0.0
    %342 = vmatpush.msra.mxu0 0.0
    %343 = vmatpush.msra.mxu0 0.0
    %344 = vmatpush.msra.mxu0 0.0
    %345 = vmatpush.msra.mxu0 %v325
    %346 = vmatmul.f32.gmra.mxu0 %v328
    %v347 = vpop.f32.mrf.mxu0
    %v348 = vadd.f32 0.0, %v347
    %349 = vdwg.mxu0
    %v350 = vrcp.pop %v323
    %v351 = vmul.f32 %v348, %v350
    %v353 = vsel %vm113, %v351, 0
    %355 = vmatpush.msra.mxu0 0.0
    %356 = vmatpush.msra.mxu0 0.0
    %357 = vmatpush.msra.mxu0 0.0
    %358 = vmatpush.msra.mxu0 0.0
    %359 = vmatpush.msra.mxu0 0.0
    %360 = vmatpush.msra.mxu0 0.0
    %361 = vmatpush.msra.mxu0 0.0
    %362 = vmatpush.msra.mxu0 0.0
    %363 = vmatpush.msra.mxu0 0.0
    %364 = vmatpush.msra.mxu0 0.0
    %365 = vmatpush.msra.mxu0 0.0
    %366 = vmatpush.msra.mxu0 0.0
    %367 = vmatpush.msra.mxu0 0.0
    %368 = vmatpush.msra.mxu0 0.0
    %369 = vmatpush.msra.mxu0 0.0
    %370 = vmatpush.msra.mxu0 %v70
    %371 = vmatmul.f32.gmra.mxu0 %v353
    %v372 = vpop.f32.mrf.mxu0
    %v373 = vadd.f32 0.0, %v372
    %374 = vdwg.mxu0
    %v375 = vadd.f32 %v285, %v373
    %376 = vrot.lane.b32.xlu0 %v102, 104
    %v377 = vpop.permute.xlu0 %376
    %378 = vrot.lane.b32.xlu0 %v97, 72
    %v379 = vpop.permute.xlu0 %378
    %v380 = vsel %vm113, %v377, 0
    %v382 = vsel %vm113, %v379, 0
    %384 = vmatpush.xpose.msra.mxu0 0.0
    %385 = vmatpush.xpose.msra.mxu0 0.0
    %386 = vmatpush.xpose.msra.mxu0 0.0
    %387 = vmatpush.xpose.msra.mxu0 0.0
    %388 = vmatpush.xpose.msra.mxu0 0.0
    %389 = vmatpush.xpose.msra.mxu0 0.0
    %390 = vmatpush.xpose.msra.mxu0 0.0
    %391 = vmatpush.xpose.msra.mxu0 0.0
    %392 = vmatpush.xpose.msra.mxu0 0.0
    %393 = vmatpush.xpose.msra.mxu0 0.0
    %394 = vmatpush.xpose.msra.mxu0 0.0
    %395 = vmatpush.xpose.msra.mxu0 0.0
    %396 = vmatpush.xpose.msra.mxu0 0.0
    %397 = vmatpush.xpose.msra.mxu0 0.0
    %398 = vmatpush.xpose.msra.mxu0 0.0
    %399 = vmatpush.xpose.msra.mxu0 %v382
    %400 = vmatmul.f32.gmra.mxu0 %v380
    %v401 = vpop.f32.mrf.mxu0
    %v402 = vadd.f32 %v109, %v401
    %403 = vdwg.mxu0
    %v404 = vsel %vm113, %v402, -inf
    %405 = vmax.xlane.f32.xlu0 %v404
    %v406 = vpop.xlane.xlu0 %405
    %v407 = vsub.f32 %v402, %v406
    %v408 = vmul.f32 %v407, 1.442695
    %v409 = vpow.pop %v408
    %v410 = vsel %vm113, %v409, 0.0
    %411 = vadd.xlane.f32.xlu0 %v410
    %v412 = vpop.xlane.xlu0 %411
    %413 = vrot.lane.b32.xlu0 %v97, 40
    %v414 = vpop.permute.xlu0 %413
    %v417 = vsel %vm113, %v409, 0
    %419 = vmatpush.msra.mxu0 0.0
    %420 = vmatpush.msra.mxu0 0.0
    %421 = vmatpush.msra.mxu0 0.0
    %422 = vmatpush.msra.mxu0 0.0
    %423 = vmatpush.msra.mxu0 0.0
    %424 = vmatpush.msra.mxu0 0.0
    %425 = vmatpush.msra.mxu0 0.0
    %426 = vmatpush.msra.mxu0 0.0
    %427 = vmatpush.msra.mxu0 0.0
    %428 = vmatpush.msra.mxu0 0.0
    %429 = vmatpush.msra.mxu0 0.0
    %430 = vmatpush.msra.mxu0 0.0
    %431 = vmatpush.msra.mxu0 0.0
    %432 = vmatpush.msra.mxu0 0.0
    %433 = vmatpush.msra.mxu0 0.0
    %434 = vmatpush.msra.mxu0 %v414
    %435 = vmatmul.f32.gmra.mxu0 %v417
    %v436 = vpop.f32.mrf.mxu0
    %v437 = vadd.f32 0.0, %v436
    %438 = vdwg.mxu0
    %v439 = vrcp.pop %v412
    %v440 = vmul.f32 %v437, %v439
    %v442 = vsel %vm113, %v440, 0
    %444 = vmatpush.msra.mxu0 0.0
    %445 = vmatpush.msra.mxu0 0.0
    %446 = vmatpush.msra.mxu0 0.0
    %447 = vmatpush.msra.mxu0 0.0
    %448 = vmatpush.msra.mxu0 0.0
    %449 = vmatpush.msra.mxu0 0.0
    %450 = vmatpush.msra.mxu0 0.0
    %451 = vmatpush.msra.mxu0 0.0
    %452 = vmatpush.msra.mxu0 0.0
    %453 = vmatpush.msra.mxu0 0.0
    %454 = vmatpush.msra.mxu0 0.0
    %455 = vmatpush.msra.mxu0 0.0
    %456 = vmatpush.msra.mxu0 0.0
    %457 = vmatpush.msra.mxu0 0.0
    %458 = vmatpush.msra.mxu0 0.0
    %459 = vmatpush.msra.mxu0 %v71
    %460 = vmatmul.f32.gmra.mxu0 %v442
    %v461 = vpop.f32.mrf.mxu0
    %v462 = vadd.f32 0.0, %v461
    %463 = vdwg.mxu0
    %v464 = vadd.f32 %v375, %v462
    %465 = vst.msk [vmem:[#allocation8] sm:$0xff] %vm72, %v464
    %467 = vrot.lane.b32.xlu0 %v100, 96
    %v468 = vpop.permute.xlu0 %467
    %v470 = vsel %vm113, %v103, 0
    %v472 = vsel %vm113, %v468, 0
    %474 = vmatpush.xpose.msra.mxu0 0.0
    %475 = vmatpush.xpose.msra.mxu0 0.0
    %476 = vmatpush.xpose.msra.mxu0 0.0
    %477 = vmatpush.xpose.msra.mxu0 0.0
    %478 = vmatpush.xpose.msra.mxu0 0.0
    %479 = vmatpush.xpose.msra.mxu0 0.0
    %480 = vmatpush.xpose.msra.mxu0 0.0
    %481 = vmatpush.xpose.msra.mxu0 0.0
    %482 = vmatpush.xpose.msra.mxu0 0.0
    %483 = vmatpush.xpose.msra.mxu0 0.0
    %484 = vmatpush.xpose.msra.mxu0 0.0
    %485 = vmatpush.xpose.msra.mxu0 0.0
    %486 = vmatpush.xpose.msra.mxu0 0.0
    %487 = vmatpush.xpose.msra.mxu0 0.0
    %488 = vmatpush.xpose.msra.mxu0 0.0
    %489 = vmatpush.xpose.msra.mxu0 %v472
    %490 = vmatmul.f32.gmra.mxu0 %v470
    %v491 = vpop.f32.mrf.mxu0
    %v492 = vadd.f32 %v109, %v491
    %493 = vdwg.mxu0
    %v494 = vsel %vm113, %v492, -inf
    %495 = vmax.xlane.f32.xlu0 %v494
    %v496 = vpop.xlane.xlu0 %495
    %v497 = vsub.f32 %v492, %v496
    %v498 = vmul.f32 %v497, 1.442695
    %v499 = vpow.pop %v498
    %v500 = vsel %vm113, %v499, 0.0
    %501 = vadd.xlane.f32.xlu0 %v500
    %v502 = vpop.xlane.xlu0 %501
    %503 = vrot.lane.b32.xlu0 %v100, 64
    %v504 = vpop.permute.xlu0 %503
    %v507 = vsel %vm113, %v499, 0
    %509 = vmatpush.msra.mxu0 0.0
    %510 = vmatpush.msra.mxu0 0.0
    %511 = vmatpush.msra.mxu0 0.0
    %512 = vmatpush.msra.mxu0 0.0
    %513 = vmatpush.msra.mxu0 0.0
    %514 = vmatpush.msra.mxu0 0.0
    %515 = vmatpush.msra.mxu0 0.0
    %516 = vmatpush.msra.mxu0 0.0
    %517 = vmatpush.msra.mxu0 0.0
    %518 = vmatpush.msra.mxu0 0.0
    %519 = vmatpush.msra.mxu0 0.0
    %520 = vmatpush.msra.mxu0 0.0
    %521 = vmatpush.msra.mxu0 0.0
    %522 = vmatpush.msra.mxu0 0.0
    %523 = vmatpush.msra.mxu0 0.0
    %524 = vmatpush.msra.mxu0 %v504
    %525 = vmatmul.f32.gmra.mxu0 %v507
    %v526 = vpop.f32.mrf.mxu0
    %v527 = vadd.f32 0.0, %v526
    %528 = vdwg.mxu0
    %v529 = vrcp.pop %v502
    %v530 = vmul.f32 %v527, %v529
    %531 = vrot.lane.b32.xlu0 %v103, 120
    %v532 = vpop.permute.xlu0 %531
    %533 = vrot.lane.b32.xlu0 %v100, 88
    %v534 = vpop.permute.xlu0 %533
    %v535 = vsel %vm113, %v532, 0
    %v537 = vsel %vm113, %v534, 0
    %539 = vmatpush.xpose.msra.mxu0 0.0
    %540 = vmatpush.xpose.msra.mxu0 0.0
    %541 = vmatpush.xpose.msra.mxu0 0.0
    %542 = vmatpush.xpose.msra.mxu0 0.0
    %543 = vmatpush.xpose.msra.mxu0 0.0
    %544 = vmatpush.xpose.msra.mxu0 0.0
    %545 = vmatpush.xpose.msra.mxu0 0.0
    %546 = vmatpush.xpose.msra.mxu0 0.0
    %547 = vmatpush.xpose.msra.mxu0 0.0
    %548 = vmatpush.xpose.msra.mxu0 0.0
    %549 = vmatpush.xpose.msra.mxu0 0.0
    %550 = vmatpush.xpose.msra.mxu0 0.0
    %551 = vmatpush.xpose.msra.mxu0 0.0
    %552 = vmatpush.xpose.msra.mxu0 0.0
    %553 = vmatpush.xpose.msra.mxu0 0.0
    %554 = vmatpush.xpose.msra.mxu0 %v537
    %555 = vmatmul.f32.gmra.mxu0 %v535
    %v556 = vpop.f32.mrf.mxu0
    %v557 = vadd.f32 %v109, %v556
    %558 = vdwg.mxu0
    %v559 = vsel %vm113, %v557, -inf
    %560 = vmax.xlane.f32.xlu0 %v559
    %v561 = vpop.xlane.xlu0 %560
    %v562 = vsub.f32 %v557, %v561
    %v563 = vmul.f32 %v562, 1.442695
    %v564 = vpow.pop %v563
    %v565 = vsel %vm113, %v564, 0.0
    %566 = vadd.xlane.f32.xlu0 %v565
    %v567 = vpop.xlane.xlu0 %566
    %568 = vrot.lane.b32.xlu0 %v100, 56
    %v569 = vpop.permute.xlu0 %568
    %v572 = vsel %vm113, %v564, 0
    %574 = vmatpush.msra.mxu0 0.0
    %575 = vmatpush.msra.mxu0 0.0
    %576 = vmatpush.msra.mxu0 0.0
    %577 = vmatpush.msra.mxu0 0.0
    %578 = vmatpush.msra.mxu0 0.0
    %579 = vmatpush.msra.mxu0 0.0
    %580 = vmatpush.msra.mxu0 0.0
    %581 = vmatpush.msra.mxu0 0.0
    %582 = vmatpush.msra.mxu0 0.0
    %583 = vmatpush.msra.mxu0 0.0
    %584 = vmatpush.msra.mxu0 0.0
    %585 = vmatpush.msra.mxu0 0.0
    %586 = vmatpush.msra.mxu0 0.0
    %587 = vmatpush.msra.mxu0 0.0
    %588 = vmatpush.msra.mxu0 0.0
    %589 = vmatpush.msra.mxu0 %v569
    %590 = vmatmul.f32.gmra.mxu0 %v572
    %v591 = vpop.f32.mrf.mxu0
    %v592 = vadd.f32 0.0, %v591
    %593 = vdwg.mxu0
    %v594 = vrcp.pop %v567
    %v595 = vmul.f32 %v592, %v594
    %v597 = vsel %vm113, %v595, 0
    %599 = vmatpush.msra.mxu0 0.0
    %600 = vmatpush.msra.mxu0 0.0
    %601 = vmatpush.msra.mxu0 0.0
    %602 = vmatpush.msra.mxu0 0.0
    %603 = vmatpush.msra.mxu0 0.0
    %604 = vmatpush.msra.mxu0 0.0
    %605 = vmatpush.msra.mxu0 0.0
    %606 = vmatpush.msra.mxu0 0.0
    %607 = vmatpush.msra.mxu0 0.0
    %608 = vmatpush.msra.mxu0 0.0
    %609 = vmatpush.msra.mxu0 0.0
    %610 = vmatpush.msra.mxu0 0.0
    %611 = vmatpush.msra.mxu0 0.0
    %612 = vmatpush.msra.mxu0 0.0
    %613 = vmatpush.msra.mxu0 0.0
    %614 = vmatpush.msra.mxu0 %v69
    %615 = vmatmul.f32.gmra.mxu0 %v597
    %v616 = vpop.f32.mrf.mxu0
    %v617 = vadd.f32 0.0, %v616
    %618 = vdwg.mxu0
    %v620 = vsel %vm113, %v530, 0
    %622 = vmatpush.msra.mxu0 0.0
    %623 = vmatpush.msra.mxu0 0.0
    %624 = vmatpush.msra.mxu0 0.0
    %625 = vmatpush.msra.mxu0 0.0
    %626 = vmatpush.msra.mxu0 0.0
    %627 = vmatpush.msra.mxu0 0.0
    %628 = vmatpush.msra.mxu0 0.0
    %629 = vmatpush.msra.mxu0 0.0
    %630 = vmatpush.msra.mxu0 0.0
    %631 = vmatpush.msra.mxu0 0.0
    %632 = vmatpush.msra.mxu0 0.0
    %633 = vmatpush.msra.mxu0 0.0
    %634 = vmatpush.msra.mxu0 0.0
    %635 = vmatpush.msra.mxu0 0.0
    %636 = vmatpush.msra.mxu0 0.0
    %637 = vmatpush.msra.mxu0 %v68
    %638 = vmatmul.f32.gmra.mxu0 %v620
    %v639 = vpop.f32.mrf.mxu0
    %v640 = vadd.f32 %v617, %v639
    %641 = vdwg.mxu0
    %642 = vrot.lane.b32.xlu0 %v103, 112
    %v643 = vpop.permute.xlu0 %642
    %644 = vrot.lane.b32.xlu0 %v100, 80
    %v645 = vpop.permute.xlu0 %644
    %v646 = vsel %vm113, %v643, 0
    %v648 = vsel %vm113, %v645, 0
    %650 = vmatpush.xpose.msra.mxu0 0.0
    %651 = vmatpush.xpose.msra.mxu0 0.0
    %652 = vmatpush.xpose.msra.mxu0 0.0
    %653 = vmatpush.xpose.msra.mxu0 0.0
    %654 = vmatpush.xpose.msra.mxu0 0.0
    %655 = vmatpush.xpose.msra.mxu0 0.0
    %656 = vmatpush.xpose.msra.mxu0 0.0
    %657 = vmatpush.xpose.msra.mxu0 0.0
    %658 = vmatpush.xpose.msra.mxu0 0.0
    %659 = vmatpush.xpose.msra.mxu0 0.0
    %660 = vmatpush.xpose.msra.mxu0 0.0
    %661 = vmatpush.xpose.msra.mxu0 0.0
    %662 = vmatpush.xpose.msra.mxu0 0.0
    %663 = vmatpush.xpose.msra.mxu0 0.0
    %664 = vmatpush.xpose.msra.mxu0 0.0
    %665 = vmatpush.xpose.msra.mxu0 %v648
    %666 = vmatmul.f32.gmra.mxu0 %v646
    %v667 = vpop.f32.mrf.mxu0
    %v668 = vadd.f32 %v109, %v667
    %669 = vdwg.mxu0
    %v670 = vsel %vm113, %v668, -inf
    %671 = vmax.xlane.f32.xlu0 %v670
    %v672 = vpop.xlane.xlu0 %671
    %v673 = vsub.f32 %v668, %v672
    %v674 = vmul.f32 %v673, 1.442695
    %v675 = vpow.pop %v674
    %v676 = vsel %vm113, %v675, 0.0
    %677 = vadd.xlane.f32.xlu0 %v676
    %v678 = vpop.xlane.xlu0 %677
    %679 = vrot.lane.b32.xlu0 %v100, 48
    %v680 = vpop.permute.xlu0 %679
    %v683 = vsel %vm113, %v675, 0
    %685 = vmatpush.msra.mxu0 0.0
    %686 = vmatpush.msra.mxu0 0.0
    %687 = vmatpush.msra.mxu0 0.0
    %688 = vmatpush.msra.mxu0 0.0
    %689 = vmatpush.msra.mxu0 0.0
    %690 = vmatpush.msra.mxu0 0.0
    %691 = vmatpush.msra.mxu0 0.0
    %692 = vmatpush.msra.mxu0 0.0
    %693 = vmatpush.msra.mxu0 0.0
    %694 = vmatpush.msra.mxu0 0.0
    %695 = vmatpush.msra.mxu0 0.0
    %696 = vmatpush.msra.mxu0 0.0
    %697 = vmatpush.msra.mxu0 0.0
    %698 = vmatpush.msra.mxu0 0.0
    %699 = vmatpush.msra.mxu0 0.0
    %700 = vmatpush.msra.mxu0 %v680
    %701 = vmatmul.f32.gmra.mxu0 %v683
    %v702 = vpop.f32.mrf.mxu0
    %v703 = vadd.f32 0.0, %v702
    %704 = vdwg.mxu0
    %v705 = vrcp.pop %v678
    %v706 = vmul.f32 %v703, %v705
    %v708 = vsel %vm113, %v706, 0
    %710 = vmatpush.msra.mxu0 0.0
    %711 = vmatpush.msra.mxu0 0.0
    %712 = vmatpush.msra.mxu0 0.0
    %713 = vmatpush.msra.mxu0 0.0
    %714 = vmatpush.msra.mxu0 0.0
    %715 = vmatpush.msra.mxu0 0.0
    %716 = vmatpush.msra.mxu0 0.0
    %717 = vmatpush.msra.mxu0 0.0
    %718 = vmatpush.msra.mxu0 0.0
    %719 = vmatpush.msra.mxu0 0.0
    %720 = vmatpush.msra.mxu0 0.0
    %721 = vmatpush.msra.mxu0 0.0
    %722 = vmatpush.msra.mxu0 0.0
    %723 = vmatpush.msra.mxu0 0.0
    %724 = vmatpush.msra.mxu0 0.0
    %725 = vmatpush.msra.mxu0 %v70
    %726 = vmatmul.f32.gmra.mxu0 %v708
    %v727 = vpop.f32.mrf.mxu0
    %v728 = vadd.f32 0.0, %v727
    %729 = vdwg.mxu0
    %v730 = vadd.f32 %v640, %v728
    %731 = vrot.lane.b32.xlu0 %v103, 104
    %v732 = vpop.permute.xlu0 %731
    %733 = vrot.lane.b32.xlu0 %v100, 72
    %v734 = vpop.permute.xlu0 %733
    %v735 = vsel %vm113, %v732, 0
    %v737 = vsel %vm113, %v734, 0
    %739 = vmatpush.xpose.msra.mxu0 0.0
    %740 = vmatpush.xpose.msra.mxu0 0.0
    %741 = vmatpush.xpose.msra.mxu0 0.0
    %742 = vmatpush.xpose.msra.mxu0 0.0
    %743 = vmatpush.xpose.msra.mxu0 0.0
    %744 = vmatpush.xpose.msra.mxu0 0.0
    %745 = vmatpush.xpose.msra.mxu0 0.0
    %746 = vmatpush.xpose.msra.mxu0 0.0
    %747 = vmatpush.xpose.msra.mxu0 0.0
    %748 = vmatpush.xpose.msra.mxu0 0.0
    %749 = vmatpush.xpose.msra.mxu0 0.0
    %750 = vmatpush.xpose.msra.mxu0 0.0
    %751 = vmatpush.xpose.msra.mxu0 0.0
    %752 = vmatpush.xpose.msra.mxu0 0.0
    %753 = vmatpush.xpose.msra.mxu0 0.0
    %754 = vmatpush.xpose.msra.mxu0 %v737
    %755 = vmatmul.f32.gmra.mxu0 %v735
    %v756 = vpop.f32.mrf.mxu0
    %v757 = vadd.f32 %v109, %v756
    %758 = vdwg.mxu0
    %v759 = vsel %vm113, %v757, -inf
    %760 = vmax.xlane.f32.xlu0 %v759
    %v761 = vpop.xlane.xlu0 %760
    %v762 = vsub.f32 %v757, %v761
    %v763 = vmul.f32 %v762, 1.442695
    %v764 = vpow.pop %v763
    %v765 = vsel %vm113, %v764, 0.0
    %766 = vadd.xlane.f32.xlu0 %v765
    %v767 = vpop.xlane.xlu0 %766
    %768 = vrot.lane.b32.xlu0 %v100, 40
    %v769 = vpop.permute.xlu0 %768
    %v772 = vsel %vm113, %v764, 0
    %774 = vmatpush.msra.mxu0 0.0
    %775 = vmatpush.msra.mxu0 0.0
    %776 = vmatpush.msra.mxu0 0.0
    %777 = vmatpush.msra.mxu0 0.0
    %778 = vmatpush.msra.mxu0 0.0
    %779 = vmatpush.msra.mxu0 0.0
    %780 = vmatpush.msra.mxu0 0.0
    %781 = vmatpush.msra.mxu0 0.0
    %782 = vmatpush.msra.mxu0 0.0
    %783 = vmatpush.msra.mxu0 0.0
    %784 = vmatpush.msra.mxu0 0.0
    %785 = vmatpush.msra.mxu0 0.0
    %786 = vmatpush.msra.mxu0 0.0
    %787 = vmatpush.msra.mxu0 0.0
    %788 = vmatpush.msra.mxu0 0.0
    %789 = vmatpush.msra.mxu0 %v769
    %790 = vmatmul.f32.gmra.mxu0 %v772
    %v791 = vpop.f32.mrf.mxu0
    %v792 = vadd.f32 0.0, %v791
    %793 = vdwg.mxu0
    %v794 = vrcp.pop %v767
    %v795 = vmul.f32 %v792, %v794
    %v797 = vsel %vm113, %v795, 0
    %799 = vmatpush.msra.mxu0 0.0
    %800 = vmatpush.msra.mxu0 0.0
    %801 = vmatpush.msra.mxu0 0.0
    %802 = vmatpush.msra.mxu0 0.0
    %803 = vmatpush.msra.mxu0 0.0
    %804 = vmatpush.msra.mxu0 0.0
    %805 = vmatpush.msra.mxu0 0.0
    %806 = vmatpush.msra.mxu0 0.0
    %807 = vmatpush.msra.mxu0 0.0
    %808 = vmatpush.msra.mxu0 0.0
    %809 = vmatpush.msra.mxu0 0.0
    %810 = vmatpush.msra.mxu0 0.0
    %811 = vmatpush.msra.mxu0 0.0
    %812 = vmatpush.msra.mxu0 0.0
    %813 = vmatpush.msra.mxu0 0.0
    %814 = vmatpush.msra.mxu0 %v71
    %815 = vmatmul.f32.gmra.mxu0 %v797
    %v816 = vpop.f32.mrf.mxu0
    %v817 = vadd.f32 0.0, %v816
    %818 = vdwg.mxu0
    %v819 = vadd.f32 %v730, %v817
    %820 = vst.msk [vmem:[#allocation8 + $0x8] sm:$0xff] %vm72, %v819
    // Predicated region
    $region26: #{tpu_custom_call.1} parent=1 // pred_check
      _
    $region27: #{tpu_custom_call.1} parent=1 // pred_check_branch
      %822 = sbr.rel (0) target = $region29
    $region28: #{tpu_custom_call.1} parent=1 // pred_region
      %824 = vsyncadd [#allocation4], 0
      %s825 = sshll.u32 [#allocation8], 4
      %s826 = int_to_ptr.vmem [resolvable:$true] %s825
      %s827 = sshll.u32 %s3, 4
      %s828 = int_to_ptr.hbm [resolvable:$true] %s827
      %833 = dma.vmem_to_hbm [thread:$0]  %s826, 256, %s828, [#allocation4], 128, 128, 8
    $region29: #{tpu_custom_call.1} parent=1 // pred_fallthru
      _
    // Predicated region
    $region30: #{tpu_custom_call.1} parent=1 // pred_check
      _
    $region31: #{tpu_custom_call.1} parent=1 // pred_check_branch
      %835 = sbr.rel (0) target = $region33
    $region32: #{tpu_custom_call.1} parent=1 // pred_region
      %837 = dma.done [#allocation4], 256
    $region33: #{tpu_custom_call.1} parent=1 // pred_fallthru
      _
    %838 = vsyncpa [#allocation3], 1
    %839 = vsyncpa [#allocation6], 1
    %840 = vsyncpa [#allocation4], 1

</llo_original>
